<compile_context>
chip_gen: v6e
topology: v6e:2x2x1
jax: 0.10.0
libtpu: 0.0.40
codegen_flags: <defaults>
</compile_context>

<pallas_src>
import functools

import jax
import jax.numpy as jnp
from jax.experimental import pallas as pl
from jax.experimental.pallas import tpu as pltpu


BRANCHES = ("np", "hv", "tp")


# ---------------------------------------------------------------------------
# Fused Pallas kernel: (stem + 3x3 conv + BN) -> ReLU -> 1x1 for all 3 heads
# ---------------------------------------------------------------------------

def _fused_heads_kernel(cols_ref, wp_ref, shift_ref, w1_ref, b1_ref, o_ref):
    """Single grid step over the whole (batch-collapsed) problem.

    cols_ref  : (M, Kp)      im2col of the raw halo window, bf16 (M = N*Ho*Wo)
    wp_ref    : (Kp, 3F)     stem + 3x3 conv + BN-scale folded weights, bf16
    shift_ref : (1, 3F)      folded BN shift + stem-bias contribution, f32
    w1_ref    : (3F, Cpad)   block-diagonal 1x1 heads, zero-padded to 128, bf16
    b1_ref    : (1, Cpad)    1x1 biases, zero-padded, f32
    o_ref     : (M, Cpad)    f32 output (lane-dense, unmasked stores)
    """
    # All three 3x3 convs + the folded pointwise stem + BN scale: one matmul.
    h = jnp.dot(cols_ref[...], wp_ref[...], preferred_element_type=jnp.float32)
    # BatchNorm2d (inference affine; scale already in wp) + ReLU.
    # Dropout2d(p=0.3) is identity in eval mode.
    h = jnp.maximum(h + shift_ref[0, :], 0.0)
    # All three 1x1 heads as one block-diagonal matmul (zero-padded to 128
    # lanes so the output store is a full-vreg unmasked vst).
    y = jnp.dot(h.astype(w1_ref.dtype), w1_ref[...],
                preferred_element_type=jnp.float32) + b1_ref[0, :]
    o_ref[...] = y


def _fused_heads_call(cols, fused):
    M, Kp = cols.shape
    C3 = fused["wp"].shape[1]
    Cpad = fused["w1"].shape[1]
    return pl.pallas_call(
        _fused_heads_kernel,
        out_shape=jax.ShapeDtypeStruct((M, Cpad), jnp.float32),
        grid=(1,),
        in_specs=[
            pl.BlockSpec((M, Kp), lambda i: (0, 0)),
            pl.BlockSpec((Kp, C3), lambda i: (0, 0)),
            pl.BlockSpec((1, C3), lambda i: (0, 0)),
            pl.BlockSpec((C3, Cpad), lambda i: (0, 0)),
            pl.BlockSpec((1, Cpad), lambda i: (0, 0)),
        ],
        out_specs=pl.BlockSpec((M, Cpad), lambda i: (0, 0)),
        compiler_params=pltpu.CompilerParams(
            dimension_semantics=("arbitrary",)),
    )(cols, fused["wp"], fused["shift"], fused["w1"], fused["b1"])


# ---------------------------------------------------------------------------
# Parameter fusion (done ONCE at init, outside the jitted forward)
# ---------------------------------------------------------------------------

def fuse_params(params):
    cin, F = params["stem_w"].shape
    # (9, F, 3F): per-tap 3x3 weights with the three branches concatenated.
    w3_all = jnp.stack(
        [jnp.concatenate([params[b]["w3"][k] for b in BRANCHES], axis=-1)
         for k in range(9)], axis=0)
    scale = jnp.concatenate([params[b]["scale"] for b in BRANCHES])   # (3F,)
    shift = jnp.concatenate([params[b]["shift"] for b in BRANCHES])   # (3F,)

    # Fold the pointwise stem + BN scale into the conv weights:
    #   Wp[k*Cin + c, j] = (sum_f stem_w[c,f] * w3_all[k,f,j]) * scale[j]
    wp = jnp.einsum("cf,kfj->kcj", params["stem_w"], w3_all)  # (9, Cin, 3F)
    wp = (wp * scale).reshape(9 * cin, 3 * F)
    # Stem bias folded through the 9 taps and BN into the shift.
    const = jnp.einsum("f,kfj->j", params["stem_b"], w3_all)  # (3F,)
    shift_p = shift + scale * const

    # Pad the contraction dim to a multiple of 8 (sublane alignment).
    kpad = ((9 * cin + 7) // 8) * 8
    wp = jnp.pad(wp, ((0, kpad - 9 * cin), (0, 0)))

    # Block-diagonal 1x1 heads, zero-padded to a lane-dense (>=128) width.
    couts = [int(params[b]["w1"].shape[1]) for b in BRANCHES]
    ctot = sum(couts)
    cpad = max(128, ((ctot + 127) // 128) * 128)
    w1 = jnp.zeros((3 * F, cpad), jnp.float32)
    b1 = jnp.zeros((cpad,), jnp.float32)
    off = 0
    for bi, b in enumerate(BRANCHES):
        co = couts[bi]
        w1 = w1.at[bi * F:(bi + 1) * F, off:off + co].set(params[b]["w1"])
        b1 = b1.at[off:off + co].set(params[b]["b1"])
        off += co

    fused = dict(
        wp=wp.astype(jnp.bfloat16),
        shift=shift_p.reshape(1, 3 * F).astype(jnp.float32),
        w1=w1.astype(jnp.bfloat16),
        b1=b1.reshape(1, cpad).astype(jnp.float32),
    )
    return fused, tuple(couts)


# ---------------------------------------------------------------------------
# Full forward pass (crop-first; im2col and channel split are wrapper plumbing)
# ---------------------------------------------------------------------------

def hover_swin_net_forward(x_nchw, fused, couts, cropping=(92, 92)):
    x = jnp.transpose(x_nchw, (0, 2, 3, 1))            # NCHW -> NHWC
    N, H, W, Cin = x.shape
    ch, cw = cropping
    t, b = ch // 2, ch - ch // 2
    l, r = cw // 2, cw - cw // 2
    Ho, Wo = H - ch, W - cw
    assert t >= 1 and b >= 1 and l >= 1 and r >= 1, (
        "crop margins must cover the 1-pixel conv halo")

    # Crop-first: the surviving output region plus a 1-pixel halo (exact —
    # the halo is strictly interior so zero-padding is never touched).
    xh = x[:, t - 1:H - b + 1, l - 1:W - r + 1, :]      # (N, Ho+2, Wo+2, Cin)

    # im2col of the raw halo window (stem is folded into the weights):
    # tap-major (k = dy*3+dx), channel fastest -> (N*Ho*Wo, 9*Cin).
    cols = jnp.stack(
        [xh[:, dy:dy + Ho, dx:dx + Wo, :] for dy in range(3) for dx in range(3)],
        axis=3)                                         # (N, Ho, Wo, 9, Cin)
    cols = cols.reshape(N * Ho * Wo, 9 * Cin)
    kpad = fused["wp"].shape[0]
    cols = jnp.pad(cols, ((0, 0), (0, kpad - 9 * Cin))).astype(jnp.bfloat16)

    y = _fused_heads_call(cols, fused)                  # (M, Cpad) f32
    ctot = sum(couts)
    y = y[:, :ctot].reshape(N, Ho, Wo, ctot)

    outs = {}
    off = 0
    for bi, name in enumerate(BRANCHES):
        co = couts[bi]
        outs[name] = jnp.transpose(y[..., off:off + co], (0, 3, 1, 2))  # NCHW
        off += co
    return outs


# ---------------------------------------------------------------------------
# Parameter initialization (deterministic, synthetic)
# ---------------------------------------------------------------------------

def init_branch_params(key, f, cout):
    k1, k2, k3, k4, k5, k6, k7 = jax.random.split(key, 7)
    w3 = jax.random.normal(k1, (9, f, f), jnp.float32) * (1.0 / jnp.sqrt(9.0 * f))
    gamma = 1.0 + 0.1 * jax.random.normal(k2, (f,), jnp.float32)
    beta = 0.1 * jax.random.normal(k3, (f,), jnp.float32)
    rmean = 0.1 * jax.random.normal(k4, (f,), jnp.float32)
    rvar = jnp.abs(1.0 + 0.1 * jax.random.normal(k5, (f,), jnp.float32))
    eps = 1e-5
    scale = gamma / jnp.sqrt(rvar + eps)
    shift = beta - rmean * scale
    w1 = jax.random.normal(k6, (f, cout), jnp.float32) * (1.0 / jnp.sqrt(float(f)))
    b1 = 0.01 * jax.random.normal(k7, (cout,), jnp.float32)
    return dict(w3=w3, scale=scale, shift=shift, w1=w1, b1=b1)


def init_params(key, in_channels, feature_size, out_channels_dict):
    k_stem_w, k_stem_b, k_np, k_hv, k_tp = jax.random.split(key, 5)
    return {
        "stem_w": jax.random.normal(
            k_stem_w, (in_channels, feature_size), jnp.float32)
        * (1.0 / jnp.sqrt(float(in_channels))),
        "stem_b": 0.01 * jax.random.normal(k_stem_b, (feature_size,), jnp.float32),
        "np": init_branch_params(k_np, feature_size, out_channels_dict["np"]),
        "hv": init_branch_params(k_hv, feature_size, out_channels_dict["hv"]),
        "tp": init_branch_params(k_tp, feature_size, out_channels_dict["tp"]),
    }


# ---------------------------------------------------------------------------
# Pure-JAX reference (full-resolution, UNFUSED path, cropped at the end)
# ---------------------------------------------------------------------------

def reference_forward(x_nchw, params, cropping=(92, 92)):
    hp = jax.lax.Precision.HIGHEST
    x = jnp.transpose(x_nchw, (0, 2, 3, 1))
    N, H, W, _ = x.shape
    feat = jnp.einsum("nhwc,cf->nhwf", x, params["stem_w"], precision=hp)
    feat = feat + params["stem_b"]
    ch, cw = cropping
    t, b = ch // 2, ch - ch // 2
    l, r = cw // 2, cw - cw // 2
    outs = {}
    for name in BRANCHES:
        p = params[name]
        fp = jnp.pad(feat, ((0, 0), (1, 1), (1, 1), (0, 0)))
        acc = jnp.zeros((N, H, W, p["w3"].shape[2]), jnp.float32)
        for k in range(9):
            dy, dx = k // 3, k % 3
            acc = acc + jnp.einsum("nhwc,cf->nhwf",
                                   fp[:, dy:dy + H, dx:dx + W, :], p["w3"][k],
                                   precision=hp)
        h = jnp.maximum(acc * p["scale"] + p["shift"], 0.0)
        y = jnp.einsum("nhwf,fo->nhwo", h, p["w1"], precision=hp) + p["b1"]
        y = y[:, t:H - b, l:W - r, :]
        outs[name] = jnp.transpose(y, (0, 3, 1, 2))
    return outs


# ---------------------------------------------------------------------------
# Main
# ---------------------------------------------------------------------------

if __name__ == "__main__":
    # batch=2, in_channels=3, spatial 96 (> 92 so crop_op([92,92]) is valid),
    # feature_size=32, heads np/hv/tp with 2/2/4 output channels.
    BATCH, IN_CH, IMG, FEAT = 2, 3, 96, 32
    OUT_CH = {"np": 2, "hv": 2, "tp": 4}

    key = jax.random.PRNGKey(0)
    k_x, k_p = jax.random.split(key)
    x = jax.random.normal(k_x, (BATCH, IN_CH, IMG, IMG), jnp.float32)
    params = init_params(k_p, IN_CH, FEAT, OUT_CH)

    # Parameter fusion hoisted out of the forward: built once here.
    fused, couts = fuse_params(params)
    forward = jax.jit(functools.partial(
        hover_swin_net_forward, fused=fused, couts=couts))

    out = forward(x)
    jax.block_until_ready(out)

    assert out["np"].shape == (BATCH, 2, IMG - 92, IMG - 92)
    assert out["hv"].shape == (BATCH, 2, IMG - 92, IMG - 92)
    assert out["tp"].shape == (BATCH, 4, IMG - 92, IMG - 92)

    # Correctness check against the pure-JAX full-resolution unfused reference.
    ref = reference_forward(x, params)
    for name in BRANCHES:
        assert bool(jnp.allclose(out[name], ref[name], rtol=5e-2, atol=5e-2)), (
            f"mismatch in branch {name}")

    print("KERNEL_OK")
</pallas_src>

<mosaic_0001>
module attributes {stable_mosaic.version = 11 : i64} {
  func.func @_fused_heads_kernel(%arg0: i32, %arg1: memref<32x32xbf16, #tpu.memory_space<vmem>>, %arg2: memref<32x96xbf16, #tpu.memory_space<vmem>>, %arg3: memref<1x96xf32, #tpu.memory_space<vmem>>, %arg4: memref<96x128xbf16, #tpu.memory_space<vmem>>, %arg5: memref<1x128xf32, #tpu.memory_space<vmem>>, %arg6: memref<32x128xf32, #tpu.memory_space<vmem>>) attributes {dimension_semantics = [#tpu.dimension_semantics<arbitrary>], iteration_bounds = array<i64: 1>, scalar_prefetch = 0 : i64, scratch_operands = 0 : i64, tpu.core_type = #tpu.core_type<tc>, window_params = [{pipeline_mode = #tpu.pipeline_mode<synchronous>, transform_indices = @transform_0, window_bounds = array<i64: 32, 32>}, {pipeline_mode = #tpu.pipeline_mode<synchronous>, transform_indices = @transform_1, window_bounds = array<i64: 32, 96>}, {pipeline_mode = #tpu.pipeline_mode<synchronous>, transform_indices = @transform_2, window_bounds = array<i64: 1, 96>}, {pipeline_mode = #tpu.pipeline_mode<synchronous>, transform_indices = @transform_3, window_bounds = array<i64: 96, 128>}, {pipeline_mode = #tpu.pipeline_mode<synchronous>, transform_indices = @transform_4, window_bounds = array<i64: 1, 128>}, {pipeline_mode = #tpu.pipeline_mode<synchronous>, transform_indices = @transform_5, window_bounds = array<i64: 32, 128>}]} {
    %c0 = arith.constant 0 : index
    %c0_0 = arith.constant 0 : index
    %0 = vector.load %arg1[%c0, %c0_0] : memref<32x32xbf16, #tpu.memory_space<vmem>>, vector<32x32xbf16>
    %c0_1 = arith.constant 0 : index
    %c0_2 = arith.constant 0 : index
    %1 = vector.load %arg2[%c0_1, %c0_2] : memref<32x96xbf16, #tpu.memory_space<vmem>>, vector<32x96xbf16>
    %cst = arith.constant dense<0.000000e+00> : vector<32x96xf32>
    %2 = tpu.matmul %0, %1, %cst {dimension_numbers = #tpu.dot_dimension_numbers<[1], [0], [0], [1], [0, 0, 1, 1], [], []>} : vector<32x32xbf16>, vector<32x96xbf16>, vector<32x96xf32> -> vector<32x96xf32>
    %c0_3 = arith.constant 0 : index
    %c0_4 = arith.constant 0 : index
    %3 = vector.load %arg3[%c0_3, %c0_4] : memref<1x96xf32, #tpu.memory_space<vmem>>, vector<1x96xf32>
    %4 = vector.shape_cast %3 : vector<1x96xf32> to vector<96xf32>
    %5 = vector.shape_cast %4 : vector<96xf32> to vector<1x96xf32>
    %6 = vector.broadcast %5 : vector<1x96xf32> to vector<32x96xf32>
    %7 = arith.addf %2, %6 : vector<32x96xf32>
    %cst_5 = arith.constant 0.000000e+00 : f32
    %8 = vector.broadcast %cst_5 : f32 to vector<32x96xf32>
    %9 = arith.maximumf %7, %8 : vector<32x96xf32>
    %10 = arith.truncf %9 : vector<32x96xf32> to vector<32x96xbf16>
    %c0_6 = arith.constant 0 : index
    %c0_7 = arith.constant 0 : index
    %11 = vector.load %arg4[%c0_6, %c0_7] : memref<96x128xbf16, #tpu.memory_space<vmem>>, vector<96x128xbf16>
    %cst_8 = arith.constant dense<0.000000e+00> : vector<32x128xf32>
    %12 = tpu.matmul %10, %11, %cst_8 {dimension_numbers = #tpu.dot_dimension_numbers<[1], [0], [0], [1], [0, 0, 1, 1], [], []>} : vector<32x96xbf16>, vector<96x128xbf16>, vector<32x128xf32> -> vector<32x128xf32>
    %c0_9 = arith.constant 0 : index
    %c0_10 = arith.constant 0 : index
    %13 = vector.load %arg5[%c0_9, %c0_10] : memref<1x128xf32, #tpu.memory_space<vmem>>, vector<1x128xf32>
    %14 = vector.shape_cast %13 : vector<1x128xf32> to vector<128xf32>
    %15 = vector.shape_cast %14 : vector<128xf32> to vector<1x128xf32>
    %16 = vector.broadcast %15 : vector<1x128xf32> to vector<32x128xf32>
    %17 = arith.addf %12, %16 : vector<32x128xf32>
    %c0_11 = arith.constant 0 : index
    %c0_12 = arith.constant 0 : index
    %18 = vector.load %arg6[%c0_11, %c0_12] : memref<32x128xf32, #tpu.memory_space<vmem>>, vector<32x128xf32>
    tpu.vector_store %arg6[%c0_11, %c0_12], %17 {strides = array<i32>} : memref<32x128xf32, #tpu.memory_space<vmem>>, vector<32x128xf32>,
    return
  }
  func.func @transform_0(%arg0: i32) -> (i32, i32) {
    %c0_i32 = arith.constant 0 : i32
    %c0_i32_0 = arith.constant 0 : i32
    %c0_i32_1 = arith.constant 0 : i32
    return %c0_i32, %c0_i32_0 : i32, i32
  }
  func.func @transform_1(%arg0: i32) -> (i32, i32) {
    %c0_i32 = arith.constant 0 : i32
    %c0_i32_0 = arith.constant 0 : i32
    %c0_i32_1 = arith.constant 0 : i32
    return %c0_i32, %c0_i32_0 : i32, i32
  }
  func.func @transform_2(%arg0: i32) -> (i32, i32) {
    %c0_i32 = arith.constant 0 : i32
    %c0_i32_0 = arith.constant 0 : i32
    %c0_i32_1 = arith.constant 0 : i32
    return %c0_i32, %c0_i32_0 : i32, i32
  }
  func.func @transform_3(%arg0: i32) -> (i32, i32) {
    %c0_i32 = arith.constant 0 : i32
    %c0_i32_0 = arith.constant 0 : i32
    %c0_i32_1 = arith.constant 0 : i32
    return %c0_i32, %c0_i32_0 : i32, i32
  }
  func.func @transform_4(%arg0: i32) -> (i32, i32) {
    %c0_i32 = arith.constant 0 : i32
    %c0_i32_0 = arith.constant 0 : i32
    %c0_i32_1 = arith.constant 0 : i32
    return %c0_i32, %c0_i32_0 : i32, i32
  }
  func.func @transform_5(%arg0: i32) -> (i32, i32) {
    %c0_i32 = arith.constant 0 : i32
    %c0_i32_0 = arith.constant 0 : i32
    %c0_i32_1 = arith.constant 0 : i32
    return %c0_i32, %c0_i32_0 : i32, i32
  }
}

</mosaic_0001>

<llo_original>
// kernel: hover_swin_net_forward.1
$region0: #{hover_swin_net_forward.1}
  #allocation0 [shape = 'u32[]', space=smem, size = 0x4, offset = 0x4, fixed_abs, tag = 'smem constant byte address 0x4 - core index']
  #allocation1 [shape = 'u32[144,128]{1,0:T(1,128)}', space=vmem, size = 0x12000, scoped, tag = 'internal scratch']
  %s0 = inlined_call_operand.vmem [shape: bf16[32,32], index: 0, kind: input, shape index: {}]
  %s1 = inlined_call_operand.vmem [shape: bf16[32,96], index: 1, kind: input, shape index: {}]
  %s2 = inlined_call_operand.vmem [shape: f32[1,96], index: 2, kind: input, shape index: {}]
  %s3 = inlined_call_operand.vmem [shape: bf16[96,128], index: 3, kind: input, shape index: {}]
  %s4 = inlined_call_operand.vmem [shape: f32[1,128], index: 4, kind: input, shape index: {}]
  %s5 = inlined_call_operand.vmem [shape: f32[32,128], index: 5, kind: output, shape index: {}]
  %s6 = sld [smem:[#allocation0]]
  $region30: #{hover_swin_net_forward.1} parent=0
    _
  %s8 = ssub.s32 1, %s6
  %s9 = scalar_select 0, %s8, %s6
  // Predicated region
  $region2: #{hover_swin_net_forward.1} parent=0 // pred_check
    _
  $region3: #{hover_swin_net_forward.1} parent=0 // pred_check_branch
    %11 = sbr.rel (0) target = $region5
  $region4: #{hover_swin_net_forward.1} parent=0 // pred_region
    _
  $region5: #{hover_swin_net_forward.1} parent=0 // pred_fallthru
    _
  // Predicated region
  $region6: #{hover_swin_net_forward.1} parent=0 // pred_check
    _
  $region7: #{hover_swin_net_forward.1} parent=0 // pred_check_branch
    %13 = sbr.rel (0) target = $region9
  $region8: #{hover_swin_net_forward.1} parent=0 // pred_region
    _
  $region9: #{hover_swin_net_forward.1} parent=0 // pred_fallthru
    _
  // Predicated region
  $region10: #{hover_swin_net_forward.1} parent=0 // pred_check
    _
  $region11: #{hover_swin_net_forward.1} parent=0 // pred_check_branch
    %15 = sbr.rel (0) target = $region13
  $region12: #{hover_swin_net_forward.1} parent=0 // pred_region
    _
  $region13: #{hover_swin_net_forward.1} parent=0 // pred_fallthru
    _
  // Predicated region
  $region14: #{hover_swin_net_forward.1} parent=0 // pred_check
    _
  $region15: #{hover_swin_net_forward.1} parent=0 // pred_check_branch
    %17 = sbr.rel (0) target = $region17
  $region16: #{hover_swin_net_forward.1} parent=0 // pred_region
    _
  $region17: #{hover_swin_net_forward.1} parent=0 // pred_fallthru
    _
  // Predicated region
  $region18: #{hover_swin_net_forward.1} parent=0 // pred_check
    _
  $region19: #{hover_swin_net_forward.1} parent=0 // pred_check_branch
    %19 = sbr.rel (0) target = $region21
  $region20: #{hover_swin_net_forward.1} parent=0 // pred_region
    _
  $region21: #{hover_swin_net_forward.1} parent=0 // pred_fallthru
    _
  %v21 = vld [vmem:[%s0] sm:$0xf]
  %v22 = vld [vmem:[%s0 + $0x4] sm:$0xf]
  %v23 = vld [vmem:[%s0 + $0x8] sm:$0xf]
  %v24 = vld [vmem:[%s0 + $0xc] sm:$0xf]
  %v25 = vld [vmem:[%s1] sm:$0xf]
  %v26 = vld [vmem:[%s1 + $0x4] sm:$0xf]
  %v27 = vld [vmem:[%s1 + $0x8] sm:$0xf]
  %v28 = vld [vmem:[%s1 + $0xc] sm:$0xf]
  %v29 = vld [vmem:[%s2] sm:$0x1]
  %v31 = vlaneseq
  %v32 = vshrl.u32 %v31, 7
  %v33 = vsub.s32 0, %v32
  %v34 = vrot.slane %v29, %v33
  %v40 = vunpack.c.l.b16 %v21
  %v41 = vunpack.c.l.b16 %v22
  %v42 = vunpack.c.l.b16 %v23
  %v43 = vunpack.c.l.b16 %v24
  %v44 = vpack.c.b16 %v41, %v40
  %v45 = vpack.c.b16 %v43, %v42
  %v50 = vunpack.c.l.b16 %v25
  %v51 = vunpack.c.l.b16 %v26
  %v52 = vunpack.c.l.b16 %v27
  %v53 = vunpack.c.l.b16 %v28
  %v54 = vpack.c.b16 %v51, %v50
  %v55 = vpack.c.b16 %v53, %v52
  %vm58 = vcmask 261120
  %v60 = vsel %vm58, %v44, 0
  %v63 = vsel %vm58, %v45, 0
  %65 = vmatprep.subr.bf16.mxu0 0
  %66 = vmatpush1.bf16.msra.mxu0 0
  %67 = vmatprep.subr.bf16.mxu0 0
  %68 = vmatpush1.bf16.msra.mxu0 0
  %69 = vmatprep.subr.bf16.mxu0 0
  %70 = vmatpush1.bf16.msra.mxu0 0
  %71 = vmatprep.subr.bf16.mxu0 0
  %72 = vmatpush1.bf16.msra.mxu0 0
  %73 = vmatprep.subr.bf16.mxu0 0
  %74 = vmatpush1.bf16.msra.mxu0 0
  %75 = vmatprep.subr.bf16.mxu0 0
  %76 = vmatpush1.bf16.msra.mxu0 0
  %77 = vmatprep.subr.bf16.mxu0 0
  %78 = vmatpush1.bf16.msra.mxu0 %v55
  %79 = vmatprep.subr.bf16.mxu0 0
  %80 = vmatpush1.bf16.msra.mxu0 %v54
  %81 = vmatprep.subr.bf16.mxu0 0
  %82 = vmatpush2.bf16.msra.mxu0 0
  %83 = vmatprep.subr.bf16.mxu0 0
  %84 = vmatpush2.bf16.msra.mxu0 0
  %85 = vmatprep.subr.bf16.mxu0 0
  %86 = vmatpush2.bf16.msra.mxu0 0
  %87 = vmatprep.subr.bf16.mxu0 0
  %88 = vmatpush2.bf16.msra.mxu0 0
  %89 = vmatprep.subr.bf16.mxu0 0
  %90 = vmatpush2.bf16.msra.mxu0 0
  %91 = vmatprep.subr.bf16.mxu0 0
  %92 = vmatpush2.bf16.msra.mxu0 0
  %93 = vmatprep.subr.bf16.mxu0 0
  %94 = vmatpush2.bf16.msra.mxu0 0
  %95 = vmatprep.subr.bf16.mxu0 0
  %96 = vmatpush2.bf16.msra.mxu0 0
  %97 = vmatprep.mubr.bf16.mxu0 0
  %98 = vmatmul.mubr.bf16.gmra.mxu0 %v60
  %v99 = vpop.f32.mrf.mxu0
  %v100 = vadd.f32 %v34, %v99
  %v101 = vpop.f32.mrf.mxu0
  %v102 = vpop.f32.mrf.mxu0
  %v103 = vadd.f32 %v34, %v102
  %v104 = vpop.f32.mrf.mxu0
  %105 = vmatprep.mubr.bf16.mxu0 0
  %106 = vmatmul.mubr.bf16.gmra.mxu0 %v63
  %v107 = vpop.f32.mrf.mxu0
  %v108 = vadd.f32 %v34, %v107
  %v109 = vpop.f32.mrf.mxu0
  %v110 = vpop.f32.mrf.mxu0
  %v111 = vadd.f32 %v34, %v110
  %v112 = vpop.f32.mrf.mxu0
  %113 = vdwg.mxu0
  %v114 = vmax.f32 %v100, 0.0
  %v115 = vmax.f32 %v103, 0.0
  %v116 = vmax.f32 %v108, 0.0
  %v117 = vmax.f32 %v111, 0.0
  %v118 = vpack.c.bf16 %v115, %v114
  %v119 = vpack.c.bf16 %v117, %v116
  %v120 = vld [vmem:[%s3] sm:$0xf]
  %v121 = vld [vmem:[%s3 + $0x4] sm:$0xf]
  %v122 = vld [vmem:[%s3 + $0x8] sm:$0xf]
  %v123 = vld [vmem:[%s3 + $0xc] sm:$0xf]
  %v124 = vld [vmem:[%s3 + $0x10] sm:$0xf]
  %v125 = vld [vmem:[%s3 + $0x14] sm:$0xf]
  %v126 = vld [vmem:[%s3 + $0x18] sm:$0xf]
  %v127 = vld [vmem:[%s3 + $0x1c] sm:$0xf]
  %v128 = vld [vmem:[%s3 + $0x20] sm:$0xf]
  %v129 = vld [vmem:[%s3 + $0x24] sm:$0xf]
  %v130 = vld [vmem:[%s3 + $0x28] sm:$0xf]
  %v131 = vld [vmem:[%s3 + $0x2c] sm:$0xf]
  %v132 = vld [vmem:[%s4] sm:$0x1]
  %v134 = vlaneseq
  %v135 = vshrl.u32 %v134, 7
  %v136 = vsub.s32 0, %v135
  %v137 = vrot.slane %v132, %v136
  %v151 = vunpack.c.l.b16 %v120
  %v152 = vunpack.c.l.b16 %v121
  %v153 = vunpack.c.l.b16 %v122
  %v154 = vunpack.c.l.b16 %v123
  %v155 = vunpack.c.l.b16 %v124
  %v156 = vunpack.c.l.b16 %v125
  %v157 = vunpack.c.l.b16 %v126
  %v158 = vunpack.c.l.b16 %v127
  %v159 = vunpack.c.l.b16 %v128
  %v160 = vunpack.c.l.b16 %v129
  %v161 = vunpack.c.l.b16 %v130
  %v162 = vunpack.c.l.b16 %v131
  %v163 = vpack.c.b16 %v152, %v151
  %v164 = vpack.c.b16 %v154, %v153
  %v165 = vpack.c.b16 %v156, %v155
  %v166 = vpack.c.b16 %v158, %v157
  %v167 = vpack.c.b16 %v160, %v159
  %v168 = vpack.c.b16 %v162, %v161
  %vm175 = vcmask 785408
  %v177 = vsel %vm175, %v118, 0
  %v180 = vsel %vm175, %v119, 0
  %182 = vmatprep.subr.bf16.mxu0 0
  %183 = vmatpush1.bf16.msra.mxu0 0
  %184 = vmatprep.subr.bf16.mxu0 0
  %185 = vmatpush1.bf16.msra.mxu0 0
  %186 = vmatprep.subr.bf16.mxu0 0
  %187 = vmatpush1.bf16.msra.mxu0 %v168
  %188 = vmatprep.subr.bf16.mxu0 0
  %189 = vmatpush1.bf16.msra.mxu0 %v167
  %190 = vmatprep.subr.bf16.mxu0 0
  %191 = vmatpush1.bf16.msra.mxu0 %v166
  %192 = vmatprep.subr.bf16.mxu0 0
  %193 = vmatpush1.bf16.msra.mxu0 %v165
  %194 = vmatprep.subr.bf16.mxu0 0
  %195 = vmatpush1.bf16.msra.mxu0 %v164
  %196 = vmatprep.subr.bf16.mxu0 0
  %197 = vmatpush1.bf16.msra.mxu0 %v163
  %198 = vmatprep.subr.bf16.mxu0 0
  %199 = vmatpush2.bf16.msra.mxu0 0
  %200 = vmatprep.subr.bf16.mxu0 0
  %201 = vmatpush2.bf16.msra.mxu0 0
  %202 = vmatprep.subr.bf16.mxu0 0
  %203 = vmatpush2.bf16.msra.mxu0 0
  %204 = vmatprep.subr.bf16.mxu0 0
  %205 = vmatpush2.bf16.msra.mxu0 0
  %206 = vmatprep.subr.bf16.mxu0 0
  %207 = vmatpush2.bf16.msra.mxu0 0
  %208 = vmatprep.subr.bf16.mxu0 0
  %209 = vmatpush2.bf16.msra.mxu0 0
  %210 = vmatprep.subr.bf16.mxu0 0
  %211 = vmatpush2.bf16.msra.mxu0 0
  %212 = vmatprep.subr.bf16.mxu0 0
  %213 = vmatpush2.bf16.msra.mxu0 0
  %214 = vmatprep.mubr.bf16.mxu0 0
  %215 = vmatmul.mubr.bf16.gmra.mxu0 %v177
  %v216 = vpop.f32.mrf.mxu0
  %v217 = vadd.f32 %v137, %v216
  %v218 = vpop.f32.mrf.mxu0
  %v219 = vpop.f32.mrf.mxu0
  %v220 = vadd.f32 %v137, %v219
  %v221 = vpop.f32.mrf.mxu0
  %222 = vmatprep.mubr.bf16.mxu0 0
  %223 = vmatmul.mubr.bf16.gmra.mxu0 %v180
  %v224 = vpop.f32.mrf.mxu0
  %v225 = vadd.f32 %v137, %v224
  %v226 = vpop.f32.mrf.mxu0
  %v227 = vpop.f32.mrf.mxu0
  %v228 = vadd.f32 %v137, %v227
  %v229 = vpop.f32.mrf.mxu0
  %230 = vdwg.mxu0
  %231 = vst [vmem:[%s5] sm:$0xff] %v217
  %232 = vst [vmem:[%s5 + $0x8] sm:$0xff] %v220
  %233 = vst [vmem:[%s5 + $0x10] sm:$0xff] %v225
  %234 = vst [vmem:[%s5 + $0x18] sm:$0xff] %v228
  // Predicated region
  $region22: #{hover_swin_net_forward.1} parent=0 // pred_check
    _
  $region23: #{hover_swin_net_forward.1} parent=0 // pred_check_branch
    %236 = sbr.rel (0) target = $region25
  $region24: #{hover_swin_net_forward.1} parent=0 // pred_region
    _
  $region25: #{hover_swin_net_forward.1} parent=0 // pred_fallthru
    _
  // Predicated region
  $region26: #{hover_swin_net_forward.1} parent=0 // pred_check
    _
  $region27: #{hover_swin_net_forward.1} parent=0 // pred_check_branch
    %238 = sbr.rel (0) target = $region29
  $region28: #{hover_swin_net_forward.1} parent=0 // pred_region
    _
  $region29: #{hover_swin_net_forward.1} parent=0 // pred_fallthru
    _

</llo_original>
